<compile_context>
chip_gen: v5e
topology: v5e:2x2
jax: 0.10.0
libtpu: 0.0.40
codegen_flags: <defaults>
</compile_context>

<pallas_src>
import math

import jax
import jax.numpy as jnp
from jax.experimental import pallas as pl
from jax.experimental.pallas import tpu as pltpu


def _lexp2_kernel(ah_ref, awt_ref, x_ref, y_ref, out_ref):
    tb, C = x_ref.shape[0], x_ref.shape[1]
    thp, wp = ah_ref.shape[0], awt_ref.shape[1]
    inv_c = jnp.float32(1.0 / C)

    ah = ah_ref[...]      # (THp, TH) row-pooling matrix (zero cols on the row tail)
    awt = awt_ref[...]    # (W, Wp)   col-pooling matrix, pre-transposed (zero rows on the col tail)

    # Vector accumulator; a single cross-lane reduction at the end of the body.
    acc = jnp.zeros((thp, wp), jnp.float32)
    for b in range(tb):                          # static unroll; tb is capped at 8
        # Channel mean accumulated channel-by-channel in f32
        # (avoids materializing a (C, TH, W) f32 upcast temp for bf16 inputs).
        xsum = x_ref[b, 0].astype(jnp.float32)
        for c in range(1, C):
            xsum = xsum + x_ref[b, c].astype(jnp.float32)
        d = xsum * inv_c - y_ref[b, 0].astype(jnp.float32)        # (TH, W)

        # AvgPool2d(patch) of the difference: A_h @ d @ A_w^T.
        pooled = jnp.dot(
            jnp.dot(ah, d, preferred_element_type=jnp.float32),
            awt, preferred_element_type=jnp.float32)              # (THp, Wp)
        acc = acc + pooled * pooled

    out_ref[...] = jnp.zeros_like(out_ref) + jnp.sum(acc)


def _pool_rows_matrix(n_out, n_in, patch):
    # (n_out, n_in): A[i, j] = 1/patch where j // patch == i.
    # Columns j >= n_out*patch (partial-window row tail) are automatically zero.
    j = jnp.arange(n_in) // patch
    return (jnp.arange(n_out)[:, None] == j[None, :]).astype(jnp.float32) / patch


def _pool_cols_matrix(n_in, n_out, patch):
    # (n_in, n_out): pre-transposed right pooling matrix.
    # Rows i >= n_out*patch (partial-window col tail) are automatically zero.
    i = jnp.arange(n_in) // patch
    return (i[:, None] == jnp.arange(n_out)[None, :]).astype(jnp.float32) / patch


def _choose_tiles(B, C, H, W, patch, itemsize,
                  target_bytes=4 * 1024 * 1024, max_pack=8):
    """Pick (tb images/step, th rows/step, crop_rows).

    th is either H (whole image) or a patch- and sublane-aligned divisor of the
    full-window height.  tb > 1 only for whole small images and is capped so
    the static per-image unroll stays small.
    """
    def tile_bytes(tb, th):
        return tb * (C + 1) * th * W * itemsize

    sublane = 8 * max(1, 4 // itemsize)                  # 8 f32, 16 bf16, 32 int8
    step = patch * sublane // math.gcd(patch, sublane)   # lcm(patch, sublane)
    Hc = (H // patch) * patch                            # rows inside full pooling windows

    if tile_bytes(1, H) <= target_bytes:
        th, crop = H, False
    else:
        cands = [t for t in range(step, Hc + 1, step)
                 if Hc % t == 0 and tile_bytes(1, t) <= target_bytes]
        if cands:
            th, crop = max(cands), (Hc < H)   # crop only the partial-window row tail
        else:
            th, crop = H, False               # fallback: whole rows (vmem_limit raised)

    tb = 1
    if th == H and not crop:
        # Pack several small images per step (amortize the ~0.35 us/step grid
        # overhead), but keep >= 2 batch groups when possible so megacore still
        # has a parallel axis, and cap packing at max_pack.
        cands = [t for t in range(1, min(B, max_pack) + 1)
                 if B % t == 0 and tile_bytes(t, th) <= target_bytes
                 and (B // t >= 2 or B == 1)]
        if cands:
            tb = max(cands)
    return tb, th, crop


def _vmem_limit_bytes(tb, C, th, W, itemsize):
    xy_tile = tb * (C + 1) * th * W * itemsize      # one x+y input buffer
    f32_row = tb * th * W * 4                       # f32 intermediates (xsum / d)
    need = 2 * xy_tile + 3 * f32_row + (4 << 20)    # double-buffered IO + temps + margin
    return int(min(max(need, 8 << 20), 48 << 20))   # 48 MiB cap: safe on v7x (64 MiB/TC)


def l_exp2(x, y, patch_size):
    B, C, H, W = x.shape
    assert y.shape == (B, 1, H, W), (x.shape, y.shape)
    Hp, Wp = H // patch_size, W // patch_size
    assert Hp > 0 and Wp > 0, "patch_size larger than spatial dims"

    itemsize = jnp.dtype(x.dtype).itemsize
    tb, th, crop_rows = _choose_tiles(B, C, H, W, patch_size, itemsize)
    if crop_rows:
        # Rare path: huge image with H % patch != 0 that must be row-tiled.
        # TODO(synk): a ragged last row tile would avoid this HBM copy too.
        H = Hp * patch_size
        x = x[:, :, :H, :]
        y = y[:, :, :H, :]

    thp = th // patch_size            # number of full row windows in one tile
    n_bgroups = B // tb
    n_htiles = H // th

    ah = _pool_rows_matrix(thp, th, patch_size)    # (THp, TH)
    awt = _pool_cols_matrix(W, Wp, patch_size)     # (W, Wp) pre-transposed

    partials = pl.pallas_call(
        _lexp2_kernel,
        out_shape=jax.ShapeDtypeStruct((n_bgroups, n_htiles, 1, 1), jnp.float32),
        grid_spec=pltpu.PrefetchScalarGridSpec(
            num_scalar_prefetch=0,
            grid=(n_bgroups, n_htiles),
            in_specs=[
                pl.BlockSpec((thp, th), lambda g, h: (0, 0)),
                pl.BlockSpec((W, Wp), lambda g, h: (0, 0)),
                pl.BlockSpec((tb, C, th, W), lambda g, h: (g, 0, h, 0)),
                pl.BlockSpec((tb, 1, th, W), lambda g, h: (g, 0, h, 0)),
            ],
            out_specs=pl.BlockSpec((1, 1, 1, 1), lambda g, h: (g, h, 0, 0)),
        ),
        compiler_params=pltpu.CompilerParams(
            dimension_semantics=("parallel", "parallel"),
            vmem_limit_bytes=_vmem_limit_bytes(tb, C, th, W, itemsize)),
    )(ah, awt, x, y)

    return jnp.sum(partials) / jnp.float32(B * Hp * Wp)


def _reference(x, y, patch):
    Hp, Wp = x.shape[2] // patch, x.shape[3] // patch
    xm = jnp.mean(x.astype(jnp.float32), axis=1, keepdims=True)

    def pool(t):
        t = t[:, :, :Hp * patch, :Wp * patch]
        Bp, Cp = t.shape[0], t.shape[1]
        t = t.reshape(Bp, Cp, Hp, patch, Wp, patch)
        return t.mean(axis=(3, 5))

    return jnp.mean((pool(xm) - pool(y.astype(jnp.float32))) ** 2)


if __name__ == "__main__":
    patch_size = 4

    # Test 1: divisible spatial size, f32.
    B, C, H, W = 2, 4, 16, 16
    key = jax.random.PRNGKey(0)
    kx, ky = jax.random.split(key)
    x = jax.random.uniform(kx, (B, C, H, W), dtype=jnp.float32)
    y = jax.random.uniform(ky, (B, 1, H, W), dtype=jnp.float32)
    d = jax.block_until_ready(l_exp2(x, y, patch_size))
    d_ref = jax.block_until_ready(_reference(x, y, patch_size))
    assert jnp.allclose(d, d_ref, atol=1e-5, rtol=1e-5), (d, d_ref)

    # Test 2: non-divisible spatial size (exercises the zero-coefficient tail
    # path, no crop copy) with several images packed per grid step.
    k2x, k2y = jax.random.split(ky)
    x2 = jax.random.uniform(k2x, (4, 3, 18, 18), dtype=jnp.float32)
    y2 = jax.random.uniform(k2y, (4, 1, 18, 18), dtype=jnp.float32)
    d2 = jax.block_until_ready(l_exp2(x2, y2, patch_size))
    d2_ref = jax.block_until_ready(_reference(x2, y2, patch_size))
    assert jnp.allclose(d2, d2_ref, atol=1e-5, rtol=1e-5), (d2, d2_ref)

    # Test 3: bf16 inputs (in-kernel f32 upcast path).
    k3x, k3y = jax.random.split(k2y)
    x3 = jax.random.uniform(k3x, (2, 3, 32, 32), dtype=jnp.float32).astype(jnp.bfloat16)
    y3 = jax.random.uniform(k3y, (2, 1, 32, 32), dtype=jnp.float32).astype(jnp.bfloat16)
    d3 = jax.block_until_ready(l_exp2(x3, y3, patch_size))
    d3_ref = jax.block_until_ready(_reference(x3, y3, patch_size))
    assert jnp.allclose(d3, d3_ref, atol=1e-5, rtol=1e-3), (d3, d3_ref)

    print("KERNEL_OK")
</pallas_src>

<mosaic_0001>
module attributes {stable_mosaic.version = 11 : i64} {
  func.func @_lexp2_kernel(%arg0: i32, %arg1: i32, %arg2: memref<4x16xf32, #tpu.memory_space<vmem>>, %arg3: memref<16x4xf32, #tpu.memory_space<vmem>>, %arg4: memref<1x4x16x16xf32, #tpu.memory_space<vmem>>, %arg5: memref<1x1x16x16xf32, #tpu.memory_space<vmem>>, %arg6: memref<1x1x1x1xf32, #tpu.memory_space<vmem>>) attributes {dimension_semantics = [#tpu.dimension_semantics<parallel>, #tpu.dimension_semantics<parallel>], iteration_bounds = array<i64: 2, 1>, scalar_prefetch = 0 : i64, scratch_operands = 0 : i64, tpu.core_type = #tpu.core_type<tc>, window_params = [{pipeline_mode = #tpu.pipeline_mode<synchronous>, transform_indices = @transform_0, window_bounds = array<i64: 4, 16>}, {pipeline_mode = #tpu.pipeline_mode<synchronous>, transform_indices = @transform_1, window_bounds = array<i64: 16, 4>}, {transform_indices = @transform_2, window_bounds = array<i64: 1, 4, 16, 16>}, {transform_indices = @transform_3, window_bounds = array<i64: 1, 1, 16, 16>}, {transform_indices = @transform_4, window_bounds = array<i64: 1, 1, 1, 1>}]} {
    %c0 = arith.constant 0 : index
    %c0_0 = arith.constant 0 : index
    %0 = vector.load %arg2[%c0, %c0_0] : memref<4x16xf32, #tpu.memory_space<vmem>>, vector<4x16xf32>
    %c0_1 = arith.constant 0 : index
    %c0_2 = arith.constant 0 : index
    %1 = vector.load %arg3[%c0_1, %c0_2] : memref<16x4xf32, #tpu.memory_space<vmem>>, vector<16x4xf32>
    %cst = arith.constant 0.000000e+00 : f32
    %2 = vector.broadcast %cst : f32 to vector<4x4xf32>
    %c0_3 = arith.constant 0 : index
    %c0_4 = arith.constant 0 : index
    %c0_5 = arith.constant 0 : index
    %c0_6 = arith.constant 0 : index
    %3 = vector.load %arg4[%c0_3, %c0_4, %c0_5, %c0_6] : memref<1x4x16x16xf32, #tpu.memory_space<vmem>>, vector<1x1x16x16xf32>
    %4 = vector.shape_cast %3 : vector<1x1x16x16xf32> to vector<16x16xf32>
    %c0_7 = arith.constant 0 : index
    %c1 = arith.constant 1 : index
    %c0_8 = arith.constant 0 : index
    %c0_9 = arith.constant 0 : index
    %5 = vector.load %arg4[%c0_7, %c1, %c0_8, %c0_9] : memref<1x4x16x16xf32, #tpu.memory_space<vmem>>, vector<1x1x16x16xf32>
    %6 = vector.shape_cast %5 : vector<1x1x16x16xf32> to vector<16x16xf32>
    %7 = arith.addf %4, %6 : vector<16x16xf32>
    %c0_10 = arith.constant 0 : index
    %c2 = arith.constant 2 : index
    %c0_11 = arith.constant 0 : index
    %c0_12 = arith.constant 0 : index
    %8 = vector.load %arg4[%c0_10, %c2, %c0_11, %c0_12] : memref<1x4x16x16xf32, #tpu.memory_space<vmem>>, vector<1x1x16x16xf32>
    %9 = vector.shape_cast %8 : vector<1x1x16x16xf32> to vector<16x16xf32>
    %10 = arith.addf %7, %9 : vector<16x16xf32>
    %c0_13 = arith.constant 0 : index
    %c3 = arith.constant 3 : index
    %c0_14 = arith.constant 0 : index
    %c0_15 = arith.constant 0 : index
    %11 = vector.load %arg4[%c0_13, %c3, %c0_14, %c0_15] : memref<1x4x16x16xf32, #tpu.memory_space<vmem>>, vector<1x1x16x16xf32>
    %12 = vector.shape_cast %11 : vector<1x1x16x16xf32> to vector<16x16xf32>
    %13 = arith.addf %10, %12 : vector<16x16xf32>
    %cst_16 = arith.constant 2.500000e-01 : f32
    %14 = vector.broadcast %cst_16 : f32 to vector<16x16xf32>
    %15 = arith.mulf %13, %14 : vector<16x16xf32>
    %c0_17 = arith.constant 0 : index
    %c0_18 = arith.constant 0 : index
    %c0_19 = arith.constant 0 : index
    %c0_20 = arith.constant 0 : index
    %16 = vector.load %arg5[%c0_17, %c0_18, %c0_19, %c0_20] : memref<1x1x16x16xf32, #tpu.memory_space<vmem>>, vector<1x1x16x16xf32>
    %17 = vector.shape_cast %16 : vector<1x1x16x16xf32> to vector<16x16xf32>
    %18 = arith.subf %15, %17 : vector<16x16xf32>
    %cst_21 = arith.constant dense<0.000000e+00> : vector<4x16xf32>
    %19 = tpu.matmul %0, %18, %cst_21 {dimension_numbers = #tpu.dot_dimension_numbers<[1], [0], [0], [1], [0, 0, 1, 1], [], []>} : vector<4x16xf32>, vector<16x16xf32>, vector<4x16xf32> -> vector<4x16xf32>
    %cst_22 = arith.constant dense<0.000000e+00> : vector<4x4xf32>
    %20 = tpu.matmul %19, %1, %cst_22 {dimension_numbers = #tpu.dot_dimension_numbers<[1], [0], [0], [1], [0, 0, 1, 1], [], []>} : vector<4x16xf32>, vector<16x4xf32>, vector<4x4xf32> -> vector<4x4xf32>
    %21 = arith.mulf %20, %20 : vector<4x4xf32>
    %22 = arith.addf %2, %21 : vector<4x4xf32>
    %cst_23 = arith.constant 0.000000e+00 : f32
    %23 = vector.broadcast %cst_23 : f32 to vector<1x1x1x1xf32>
    %24 = vector.shape_cast %22 : vector<4x4xf32> to vector<1x4x4xf32>
    %cst_24 = arith.constant dense<0.000000e+00> : vector<1xf32>
    %25 = vector.multi_reduction <add>, %24, %cst_24 [1, 2] : vector<1x4x4xf32> to vector<1xf32>
    %26 = vector.shape_cast %25 : vector<1xf32> to vector<1x1x1xf32>
    %27 = vector.extract %26[0, 0, 0] : f32 from vector<1x1x1xf32>
    %28 = vector.broadcast %27 : f32 to vector<1x1x1x1xf32>
    %29 = arith.addf %23, %28 : vector<1x1x1x1xf32>
    %c0_25 = arith.constant 0 : index
    %c0_26 = arith.constant 0 : index
    %c0_27 = arith.constant 0 : index
    %c0_28 = arith.constant 0 : index
    %30 = vector.load %arg6[%c0_25, %c0_26, %c0_27, %c0_28] : memref<1x1x1x1xf32, #tpu.memory_space<vmem>>, vector<1x1x1x1xf32>
    tpu.vector_store %arg6[%c0_25, %c0_26, %c0_27, %c0_28], %29 {strides = array<i32>} : memref<1x1x1x1xf32, #tpu.memory_space<vmem>>, vector<1x1x1x1xf32>,
    return
  }
  func.func @transform_0(%arg0: i32, %arg1: i32) -> (i32, i32) {
    %c0_i32 = arith.constant 0 : i32
    %c0_i32_0 = arith.constant 0 : i32
    %c0_i32_1 = arith.constant 0 : i32
    return %c0_i32, %c0_i32_0 : i32, i32
  }
  func.func @transform_1(%arg0: i32, %arg1: i32) -> (i32, i32) {
    %c0_i32 = arith.constant 0 : i32
    %c0_i32_0 = arith.constant 0 : i32
    %c0_i32_1 = arith.constant 0 : i32
    return %c0_i32, %c0_i32_0 : i32, i32
  }
  func.func @transform_2(%arg0: i32, %arg1: i32) -> (i32, i32, i32, i32) {
    %c0_i32 = arith.constant 0 : i32
    %c0_i32_0 = arith.constant 0 : i32
    %c0_i32_1 = arith.constant 0 : i32
    return %arg0, %c0_i32, %arg1, %c0_i32_0 : i32, i32, i32, i32
  }
  func.func @transform_3(%arg0: i32, %arg1: i32) -> (i32, i32, i32, i32) {
    %c0_i32 = arith.constant 0 : i32
    %c0_i32_0 = arith.constant 0 : i32
    %c0_i32_1 = arith.constant 0 : i32
    return %arg0, %c0_i32, %arg1, %c0_i32_0 : i32, i32, i32, i32
  }
  func.func @transform_4(%arg0: i32, %arg1: i32) -> (i32, i32, i32, i32) {
    %c0_i32 = arith.constant 0 : i32
    %c0_i32_0 = arith.constant 0 : i32
    %c0_i32_1 = arith.constant 0 : i32
    return %arg0, %arg1, %c0_i32, %c0_i32_0 : i32, i32, i32, i32
  }
}

</mosaic_0001>

<llo_original>
// kernel: tpu_custom_call.1
$region0: #{tpu_custom_call.1}
  #allocation0 [shape = 'u32[]', space=smem, size = 0x4, offset = 0x4, fixed_abs, tag = 'smem constant byte address 0x4 - core index']
  #allocation1 [shape = 'u32[72,128]{1,0:T(1,128)}', space=vmem, size = 0x9000, scoped, tag = 'internal scratch']
  %s0 = inlined_call_operand.vmem [shape: f32[4,16], index: 0, kind: input, shape index: {}]
  %s1 = inlined_call_operand.vmem [shape: f32[16,4], index: 1, kind: input, shape index: {}]
  %s2 = inlined_call_operand.hbm [shape: f32[2,4,16,16], index: 2, kind: input, shape index: {}]
  %s3 = inlined_call_operand.hbm [shape: f32[2,1,16,16], index: 3, kind: input, shape index: {}]
  %s4 = inlined_call_operand.vmem [shape: f32[2,1,1,1], index: 4, kind: output, shape index: {}]
  %s5 = sld [smem:[#allocation0]]
  $region57: #{tpu_custom_call.1} parent=0
    _
  %s7 = ssub.s32 1, %s5
  %s8 = scalar_select 0, %s7, %s5
  $region1: #{tpu_custom_call.1} parent=0
    #allocation2 [shape = 'u8[65536]{0}', space=vmem, size = 0x10000, scoped, tag = 'input window, operand 2']
    #allocation3 [shape = 's32[2]{0}', space=sflag, size = 0x8, scoped, tag = 'scoped memory for tpu_custom_call.1']
    #allocation4 [shape = 'u8[16384]{0}', space=vmem, size = 0x4000, scoped, tag = 'input window, operand 3']
    #allocation5 [shape = 's32[2]{0}', space=sflag, size = 0x8, scoped, tag = 'scoped memory for tpu_custom_call.1']
    %9 = vsyncpa [#allocation3], 0
    %s10 = scalar_lea.sflag [#allocation3], 1
    %11 = vsyncpa %s10, 0
    %12 = vsyncpa [#allocation5], 0
    %s13 = scalar_lea.sflag [#allocation5], 1
    %14 = vsyncpa %s13, 0
    loop: start=0, step=1, limit=4
    $region2: #{tpu_custom_call.1} parent=1 // loop_pre_header
      _
    $region3: #{tpu_custom_call.1} parent=1 // loop_header
      %s16 = sphi 0, %s20
      %p17 = scmp.ge.s32.totalorder %s16, 4
      %s23 = sphi 0, %s35
      %s24 = sphi 0, %s31
      %s25 = sphi 0, %s23
      %s26 = sphi 0, %s24
      %s27 = sphi 0, %s25
      %s28 = sphi 0, %s26
      %s36 = sphi 0, %s36
      %s38 = sphi 0, %s36
      %s39 = sphi 0, %s38
      %s53 = sphi 0, %s39
      %s57 = sphi 0, %s57
      %s59 = sphi 0, %s57
      %s60 = sphi 0, %s59
      %s74 = sphi 0, %s60
      %s82 = sphi 0, %s84
      %s85 = sphi 0, %s82
      %s86 = sphi 0, %s85
      %s102 = sphi 0, %s86
      %s110 = sphi 0, %s112
      %s113 = sphi 0, %s110
      %s114 = sphi 0, %s113
      %s130 = sphi 0, %s114
      %s138 = sphi 0, %s140
      %s141 = sphi 0, %s138
      %s142 = sphi 0, %s141
      %s158 = sphi 0, %s142
    $region4: #{tpu_custom_call.1} parent=1 // loop_header_branch
      %19 = sbr.rel (%p17) target = $region8
    $region5: #{tpu_custom_call.1} parent=1 // loop_body
      %s21 = ssub.s32 %s16, 1
      %s22 = ssub.s32 %s16, 2
      %s29 = sadd.s32 1, %s24
      %p30 = scmp.ge.s32.totalorder %s29, 1
      %s31 = scalar_select %p30, 0, %s29
      %s32 = sadd.s32 1, %s23
      %s33 = scalar_select %p30, %s32, %s23
      %p34 = scmp.ge.s32.totalorder %s33, 2
      %s35 = scalar_select %p34, 0, %s33
      %s37 = sadd.s32 %s36, 1
      %p40 = scmp.eq.s32.totalorder %s16, 1
      %p41 = scmp.ne.s32.totalorder %s36, %s38
      %p42 = scmp.eq.s32.totalorder %s16, 0
      %p43 = por %p41, %p42
      %p44 = scmp.ne.s32.totalorder %s36, %s38
      %p45 = scmp.eq.s32.totalorder %s21, 1
      %p46 = por %p44, %p45
      %p47 = scmp.ne.s32.totalorder %s38, %s39
      %p48 = scmp.eq.s32.totalorder %s21, 0
      %p49 = por %p47, %p48
      %p50 = scmp.ne.s32.totalorder %s38, %s39
      %p51 = scmp.eq.s32.totalorder %s22, 1
      %p52 = por %p50, %p51
      %p54 = scmp.ne.s32.totalorder %s39, %s53
      %p55 = scmp.eq.s32.totalorder %s22, 0
      %p56 = por %p54, %p55
      %s58 = sadd.s32 %s57, 1
      %p61 = scmp.eq.s32.totalorder %s16, 1
      %p62 = scmp.ne.s32.totalorder %s57, %s59
      %p63 = scmp.eq.s32.totalorder %s16, 0
      %p64 = por %p62, %p63
      %p65 = scmp.ne.s32.totalorder %s57, %s59
      %p66 = scmp.eq.s32.totalorder %s21, 1
      %p67 = por %p65, %p66
      %p68 = scmp.ne.s32.totalorder %s59, %s60
      %p69 = scmp.eq.s32.totalorder %s21, 0
      %p70 = por %p68, %p69
      %p71 = scmp.ne.s32.totalorder %s59, %s60
      %p72 = scmp.eq.s32.totalorder %s22, 1
      %p73 = por %p71, %p72
      %p75 = scmp.ne.s32.totalorder %s60, %s74
      %p76 = scmp.eq.s32.totalorder %s22, 0
      %p77 = por %p75, %p76
      %s78 = ssub.s32 %s23, %s35
      %s79 = ssub.s32 %s24, %s31
      %s80 = sor.u32 %s78, %s79
      %p81 = scmp.eq.s32.totalorder %s80, 0
      %s83 = sadd.s32 %s82, 1
      %s84 = scalar_select %p81, %s82, %s83
      %p87 = pneg %p81
      %p88 = scmp.eq.s32.totalorder %s16, 1
      %p89 = por %p87, %p88
      %p90 = scmp.ne.s32.totalorder %s82, %s85
      %p91 = scmp.eq.s32.totalorder %s16, 0
      %p92 = por %p90, %p91
      %p93 = scmp.ne.s32.totalorder %s82, %s85
      %p94 = scmp.eq.s32.totalorder %s21, 1
      %p95 = por %p93, %p94
      %p96 = scmp.ne.s32.totalorder %s85, %s86
      %p97 = scmp.eq.s32.totalorder %s21, 0
      %p98 = por %p96, %p97
      %p99 = scmp.ne.s32.totalorder %s85, %s86
      %p100 = scmp.eq.s32.totalorder %s22, 1
      %p101 = por %p99, %p100
      %p103 = scmp.ne.s32.totalorder %s86, %s102
      %p104 = scmp.eq.s32.totalorder %s22, 0
      %p105 = por %p103, %p104
      %s106 = ssub.s32 %s23, %s35
      %s107 = ssub.s32 %s24, %s31
      %s108 = sor.u32 %s106, %s107
      %p109 = scmp.eq.s32.totalorder %s108, 0
      %s111 = sadd.s32 %s110, 1
      %s112 = scalar_select %p109, %s110, %s111
      %p115 = pneg %p109
      %p116 = scmp.eq.s32.totalorder %s16, 1
      %p117 = por %p115, %p116
      %p118 = scmp.ne.s32.totalorder %s110, %s113
      %p119 = scmp.eq.s32.totalorder %s16, 0
      %p120 = por %p118, %p119
      %p121 = scmp.ne.s32.totalorder %s110, %s113
      %p122 = scmp.eq.s32.totalorder %s21, 1
      %p123 = por %p121, %p122
      %p124 = scmp.ne.s32.totalorder %s113, %s114
      %p125 = scmp.eq.s32.totalorder %s21, 0
      %p126 = por %p124, %p125
      %p127 = scmp.ne.s32.totalorder %s113, %s114
      %p128 = scmp.eq.s32.totalorder %s22, 1
      %p129 = por %p127, %p128
      %p131 = scmp.ne.s32.totalorder %s114, %s130
      %p132 = scmp.eq.s32.totalorder %s22, 0
      %p133 = por %p131, %p132
      %s134 = ssub.s32 %s23, %s35
      %s135 = ssub.s32 %s24, %s31
      %s136 = sor.u32 %s134, %s135
      %p137 = scmp.eq.s32.totalorder %s136, 0
      %s139 = sadd.s32 %s138, 1
      %s140 = scalar_select %p137, %s138, %s139
      %p143 = pneg %p137
      %p144 = scmp.eq.s32.totalorder %s16, 1
      %p145 = por %p143, %p144
      %p146 = scmp.ne.s32.totalorder %s138, %s141
      %p147 = scmp.eq.s32.totalorder %s16, 0
      %p148 = por %p146, %p147
      %p149 = scmp.ne.s32.totalorder %s138, %s141
      %p150 = scmp.eq.s32.totalorder %s21, 1
      %p151 = por %p149, %p150
      %p152 = scmp.ne.s32.totalorder %s141, %s142
      %p153 = scmp.eq.s32.totalorder %s21, 0
      %p154 = por %p152, %p153
      %p155 = scmp.ne.s32.totalorder %s141, %s142
      %p156 = scmp.eq.s32.totalorder %s22, 1
      %p157 = por %p155, %p156
      %p159 = scmp.ne.s32.totalorder %s142, %s158
      %p160 = scmp.eq.s32.totalorder %s22, 0
      %p161 = por %p159, %p160
      %p162 = scmp.le.s32.totalorder 1, %s16
      %p163 = scmp.lt.s32.totalorder %s16, 3
      %p164 = pnand %p162, %p163
      %p165 = pneg %p164
      // Predicated region
      $region9: #{tpu_custom_call.1} parent=5 // pred_check
        _
      $region10: #{tpu_custom_call.1} parent=5 // pred_check_branch
        %167 = sbr.rel (%p164) target = $region12
      $region11: #{tpu_custom_call.1} parent=5 // pred_region
        %s168 = ssub.s32 %s16, 1
        // Predicated region
        $region13: #{tpu_custom_call.1} parent=11 // pred_check
          %p169 = pneg %p49
        $region14: #{tpu_custom_call.1} parent=11 // pred_check_branch
          %171 = sbr.rel (%p169) target = $region16
        $region15: #{tpu_custom_call.1} parent=11 // pred_region
          _
        $region16: #{tpu_custom_call.1} parent=11 // pred_fallthru
          _
        // Predicated region
        $region17: #{tpu_custom_call.1} parent=11 // pred_check
          %p172 = pneg %p70
        $region18: #{tpu_custom_call.1} parent=11 // pred_check_branch
          %174 = sbr.rel (%p172) target = $region20
        $region19: #{tpu_custom_call.1} parent=11 // pred_region
          _
        $region20: #{tpu_custom_call.1} parent=11 // pred_fallthru
          _
      $region12: #{tpu_custom_call.1} parent=5 // pred_fallthru
        _
      %p175 = scmp.lt.s32.totalorder %s16, 2
      // Predicated region
      $region21: #{tpu_custom_call.1} parent=5 // pred_check
        %p176 = pneg %p175
      $region22: #{tpu_custom_call.1} parent=5 // pred_check_branch
        %178 = sbr.rel (%p176) target = $region24
      $region23: #{tpu_custom_call.1} parent=5 // pred_region
        // Predicated region
        $region25: #{tpu_custom_call.1} parent=23 // pred_check
          %p179 = pneg %p92
        $region26: #{tpu_custom_call.1} parent=23 // pred_check_branch
          %181 = sbr.rel (%p179) target = $region28
        $region27: #{tpu_custom_call.1} parent=23 // pred_region
          %s182 = sand.u32 %s82, 1
          %s183 = scalar_lea.sflag [#allocation3], %s182
          %s184 = sand.u32 %s82, 1
          %s185 = smul.addr %s184, 64
          %s186 = scalar_lea.vmem [#allocation2], %s185
          %s187 = smul.u32 2, %s24
          %189 = vsyncadd %s183, 0
          %s190 = smul.addr %s23, 8
          %s191 = sadd.s32 %s187, %s190
          %s192 = smul.addr %s191, 8
          %s193 = scalar_lea.hbm %s2, %s192
          %s194 = sshll.u32 %s193, 4
          %s195 = int_to_ptr.hbm [resolvable:$true] %s194
          %s196 = sshll.u32 %s186, 4
          %s197 = int_to_ptr.vmem [resolvable:$true] %s196
          %202 = dma.hbm_to_vmem [thread:$0]  %s195, 1024, %s197, %s183, 128, 128, 8
        $region28: #{tpu_custom_call.1} parent=23 // pred_fallthru
          _
        // Predicated region
        $region29: #{tpu_custom_call.1} parent=23 // pred_check
          %p203 = pneg %p120
        $region30: #{tpu_custom_call.1} parent=23 // pred_check_branch
          %205 = sbr.rel (%p203) target = $region32
        $region31: #{tpu_custom_call.1} parent=23 // pred_region
          %s206 = sand.u32 %s110, 1
          %s207 = scalar_lea.sflag [#allocation5], %s206
          %s208 = sand.u32 %s110, 1
          %s209 = smul.addr %s208, 16
          %s210 = scalar_lea.vmem [#allocation4], %s209
          %s211 = smul.u32 2, %s24
          %213 = vsyncadd %s207, 0
          %s214 = smul.addr %s23, 2
          %s215 = sadd.s32 %s211, %s214
          %s216 = smul.addr %s215, 8
          %s217 = scalar_lea.hbm %s3, %s216
          %s218 = sshll.u32 %s217, 4
          %s219 = int_to_ptr.hbm [resolvable:$true] %s218
          %s220 = sshll.u32 %s210, 4
          %s221 = int_to_ptr.vmem [resolvable:$true] %s220
          %226 = dma.hbm_to_vmem [thread:$0]  %s219, 256, %s221, %s207, 128, 128, 8
        $region32: #{tpu_custom_call.1} parent=23 // pred_fallthru
          _
      $region24: #{tpu_custom_call.1} parent=5 // pred_fallthru
        _
      %p227 = scmp.le.s32.totalorder 1, %s16
      %p228 = scmp.lt.s32.totalorder %s16, 3
      %p229 = pnand %p227, %p228
      %p230 = pneg %p229
      // Predicated region
      $region33: #{tpu_custom_call.1} parent=5 // pred_check
        _
      $region34: #{tpu_custom_call.1} parent=5 // pred_check_branch
        %232 = sbr.rel (%p229) target = $region36
      $region35: #{tpu_custom_call.1} parent=5 // pred_region
        %s233 = ssub.s32 %s16, 1
        %s234 = sand.u32 %s85, 1
        %s235 = scalar_lea.sflag [#allocation3], %s234
        %s236 = sand.u32 %s85, 1
        %s237 = smul.addr %s236, 64
        %s238 = scalar_lea.vmem [#allocation2], %s237
        // Predicated region
        $region37: #{tpu_custom_call.1} parent=35 // pred_check
          %p239 = pneg %p98
        $region38: #{tpu_custom_call.1} parent=35 // pred_check_branch
          %241 = sbr.rel (%p239) target = $region40
        $region39: #{tpu_custom_call.1} parent=35 // pred_region
          %243 = dma.done %s235, 1024
        $region40: #{tpu_custom_call.1} parent=35 // pred_fallthru
          _
        %s244 = sand.u32 %s113, 1
        %s245 = scalar_lea.sflag [#allocation5], %s244
        %s246 = sand.u32 %s113, 1
        %s247 = smul.addr %s246, 16
        %s248 = scalar_lea.vmem [#allocation4], %s247
        // Predicated region
        $region41: #{tpu_custom_call.1} parent=35 // pred_check
          %p249 = pneg %p126
        $region42: #{tpu_custom_call.1} parent=35 // pred_check_branch
          %251 = sbr.rel (%p249) target = $region44
        $region43: #{tpu_custom_call.1} parent=35 // pred_region
          %253 = dma.done %s245, 256
        $region44: #{tpu_custom_call.1} parent=35 // pred_fallthru
          _
        %p254 = pneg %p49
        %p255 = pneg %p46
        %p256 = pneg %p70
        %p257 = pneg %p67
        %s258 = sand.u32 %s85, 1
        %s259 = scalar_lea.sflag [#allocation3], %s258
        %s260 = sand.u32 %s85, 1
        %s261 = smul.addr %s260, 64
        %s262 = scalar_lea.vmem [#allocation2], %s261
        %p263 = pneg %p98
        %p264 = pneg %p95
        %s265 = sand.u32 %s113, 1
        %s266 = scalar_lea.sflag [#allocation5], %s265
        %s267 = sand.u32 %s113, 1
        %s268 = smul.addr %s267, 16
        %s269 = scalar_lea.vmem [#allocation4], %s268
        %p270 = pneg %p126
        %p271 = pneg %p123
        %p272 = pneg %p154
        %p273 = pneg %p151
        %p274 = scmp.lt.s32.totalorder %s25, 1
        %s275 = scalar_select %p274, %s25, 1
        %p276 = scmp.lt.s32.totalorder %s26, 0
        %s277 = scalar_select %p276, %s26, 0
        %s278 = sadd.s32 %s277, %s275
        %s279 = scalar_lea.vmem %s4, %s278
        %s280 = smul.u32 2, %s26
        %s281 = smul.u32 2, %s26
        %p282 = scmp.lt.s32.totalorder %s25, 1
        %s283 = scalar_select %p282, %s25, 1
        %p284 = scmp.lt.s32.totalorder %s26, 0
        %s285 = scalar_select %p284, %s26, 0
        %s286 = sadd.s32 %s285, %s283
        %s287 = scalar_lea.vmem %s4, %s286
        %v288 = vld [vmem:[%s0] sm:$0xf]
        %v289 = vld [vmem:[%s1] sm:$0xff]
        %v290 = vld [vmem:[%s1 + $0x8] sm:$0xff]
        %v291 = vld [vmem:[%s238] sm:$0xff]
        %v292 = vld [vmem:[%s238 + $0x8] sm:$0xff]
        %s293 = scalar_lea.vmem %s238, 16 [#allocation2]
        %v294 = vld [vmem:[%s293] sm:$0xff]
        %v295 = vld [vmem:[%s293 + $0x8] sm:$0xff]
        %v296 = vadd.f32 %v291, %v294
        %v297 = vadd.f32 %v292, %v295
        %s298 = scalar_lea.vmem %s238, 32 [#allocation2]
        %v299 = vld [vmem:[%s298] sm:$0xff]
        %v300 = vld [vmem:[%s298 + $0x8] sm:$0xff]
        %v301 = vadd.f32 %v296, %v299
        %v302 = vadd.f32 %v297, %v300
        %s303 = scalar_lea.vmem %s238, 48 [#allocation2]
        %v304 = vld [vmem:[%s303] sm:$0xff]
        %v305 = vld [vmem:[%s303 + $0x8] sm:$0xff]
        %v306 = vadd.f32 %v301, %v304
        %v307 = vadd.f32 %v302, %v305
        %v308 = vmul.f32 %v306, 0.25
        %v309 = vmul.f32 %v307, 0.25
        %v310 = vld [vmem:[%s248] sm:$0xff]
        %v311 = vld [vmem:[%s248 + $0x8] sm:$0xff]
        %v312 = vsub.f32 %v308, %v310
        %v313 = vsub.f32 %v309, %v311
        %vm314 = vcmask 130048
        %v316 = vsel %vm314, %v288, 0
        %318 = vmatpush.msra.mxu0 0.0
        %319 = vmatpush.msra.mxu0 0.0
        %320 = vmatpush.msra.mxu0 0.0
        %321 = vmatpush.msra.mxu0 0.0
        %322 = vmatpush.msra.mxu0 0.0
        %323 = vmatpush.msra.mxu0 0.0
        %324 = vmatpush.msra.mxu0 0.0
        %325 = vmatpush.msra.mxu0 0.0
        %326 = vmatpush.msra.mxu0 0.0
        %327 = vmatpush.msra.mxu0 0.0
        %328 = vmatpush.msra.mxu0 0.0
        %329 = vmatpush.msra.mxu0 0.0
        %330 = vmatpush.msra.mxu0 0.0
        %331 = vmatpush.msra.mxu0 0.0
        %332 = vmatpush.msra.mxu0 %v313
        %333 = vmatpush.msra.mxu0 %v312
        %334 = vmatmul.f32.gmra.mxu0 %v316
        %v335 = vpop.f32.mrf.mxu0
        %v336 = vadd.f32 0.0, %v335
        %337 = vdwg.mxu0
        %v339 = vsel %vm314, %v336, 0
        %341 = vmatpush.msra.mxu0 0.0
        %342 = vmatpush.msra.mxu0 0.0
        %343 = vmatpush.msra.mxu0 0.0
        %344 = vmatpush.msra.mxu0 0.0
        %345 = vmatpush.msra.mxu0 0.0
        %346 = vmatpush.msra.mxu0 0.0
        %347 = vmatpush.msra.mxu0 0.0
        %348 = vmatpush.msra.mxu0 0.0
        %349 = vmatpush.msra.mxu0 0.0
        %350 = vmatpush.msra.mxu0 0.0
        %351 = vmatpush.msra.mxu0 0.0
        %352 = vmatpush.msra.mxu0 0.0
        %353 = vmatpush.msra.mxu0 0.0
        %354 = vmatpush.msra.mxu0 0.0
        %355 = vmatpush.msra.mxu0 %v290
        %356 = vmatpush.msra.mxu0 %v289
        %357 = vmatmul.f32.gmra.mxu0 %v339
        %v358 = vpop.f32.mrf.mxu0
        %v359 = vadd.f32 0.0, %v358
        %360 = vdwg.mxu0
        %v361 = vmul.f32 %v359, %v359
        %v362 = vadd.f32 %v361, 0.0
        %vm363 = vcmask 27648
        %v364 = vsel %vm363, %v362, 0.0
        %365 = vadd.xlane.f32.xlu0 %v364
        %v366 = vpop.xlane.xlu0 %365
        %v367 = vrot.slane %v366, 4
        %v368 = vadd.f32 %v366, %v367
        %v369 = vrot.slane %v368, 2
        %v370 = vadd.f32 %v368, %v369
        %v371 = vrot.slane %v370, 1
        %v372 = vadd.f32 %v370, %v371
        %s373 = vtos %v372
        %v374 = vstv %s373
        %v375 = vadd.f32 %v374, 0.0
        %vm376 = vcmask 0
        %377 = vst.msk [vmem:[%s287] sm:$0x1] %vm376, %v375
        %p378 = scmp.lt.s32.totalorder %s25, 1
        %s379 = scalar_select %p378, %s25, 1
        %p380 = scmp.lt.s32.totalorder %s26, 0
        %s381 = scalar_select %p380, %s26, 0
        %s382 = sadd.s32 %s381, %s379
        %s383 = scalar_lea.vmem %s4, %s382
        // Predicated region
        $region45: #{tpu_custom_call.1} parent=35 // pred_check
          %p384 = pneg %p151
        $region46: #{tpu_custom_call.1} parent=35 // pred_check_branch
          %386 = sbr.rel (%p384) target = $region48
        $region47: #{tpu_custom_call.1} parent=35 // pred_region
          _
        $region48: #{tpu_custom_call.1} parent=35 // pred_fallthru
          _
      $region36: #{tpu_custom_call.1} parent=5 // pred_fallthru
        _
      %p387 = scmp.le.s32.totalorder 2, %s16
      // Predicated region
      $region49: #{tpu_custom_call.1} parent=5 // pred_check
        %p388 = pneg %p387
      $region50: #{tpu_custom_call.1} parent=5 // pred_check_branch
        %390 = sbr.rel (%p388) target = $region52
      $region51: #{tpu_custom_call.1} parent=5 // pred_region
        %s391 = ssub.s32 %s16, 2
        // Predicated region
        $region53: #{tpu_custom_call.1} parent=51 // pred_check
          %p392 = pneg %p157
        $region54: #{tpu_custom_call.1} parent=51 // pred_check_branch
          %394 = sbr.rel (%p392) target = $region56
        $region55: #{tpu_custom_call.1} parent=51 // pred_region
          %p395 = scmp.lt.s32.totalorder %s27, 1
          %s396 = scalar_select %p395, %s27, 1
          %p397 = scmp.lt.s32.totalorder %s28, 0
          %s398 = scalar_select %p397, %s28, 0
          %s399 = sadd.s32 %s398, %s396
          %s400 = scalar_lea.vmem %s4, %s399
        $region56: #{tpu_custom_call.1} parent=51 // pred_fallthru
          _
      $region52: #{tpu_custom_call.1} parent=5 // pred_fallthru
        _
    $region6: #{tpu_custom_call.1} parent=1 // loop_footer
      %s20 = sadd.s32 1, %s16
    $region7: #{tpu_custom_call.1} parent=1 // loop_footer_branch
      %15 = sbr.rel target = $region3
    $region8: #{tpu_custom_call.1} parent=1 // loop_exit
      _
    %401 = vsyncpa [#allocation3], 1
    %s402 = scalar_lea.sflag [#allocation3], 1
    %403 = vsyncpa %s402, 1
    %404 = vsyncpa [#allocation5], 1
    %s405 = scalar_lea.sflag [#allocation5], 1
    %406 = vsyncpa %s405, 1

</llo_original>
